<compile_context>
chip_gen: v6e
topology: v6e:2x2x1
jax: 0.10.0
libtpu: 0.0.40
codegen_flags: <defaults>
</compile_context>

<pallas_src>
import jax
import jax.numpy as jnp
from jax.experimental import pallas as pl
from jax.experimental.pallas import tpu as pltpu


def _round_up(x: int, m: int) -> int:
    return ((x + m - 1) // m) * m


def critic_kernel(state_ref, action_ref, w1s_ref, w1a_ref, b1_ref,
                  w2_ref, b2_ref, w3_ref, b3_ref, out_ref):
    # Layer 1 (fused "concat" linear): h1 = relu(W1s @ s + W1a @ a + b1), (Hp, TM).
    h1 = jnp.dot(w1s_ref[...], state_ref[...], preferred_element_type=jnp.float32)
    h1 = h1 + jnp.dot(action_ref[...].T.T if False else w1a_ref[...] @ action_ref[...],
                      0.0) if False else h1 + jnp.dot(
        w1a_ref[...], action_ref[...], preferred_element_type=jnp.float32)
    h1 = jnp.maximum(h1 + b1_ref[...], 0.0)                       # f32 VPU

    # Layer 2: h2 = relu(W2 @ h1 + b2), (Hp, TM).
    h2 = jnp.dot(w2_ref[...], h1.astype(w2_ref.dtype),
                 preferred_element_type=jnp.float32)
    h2 = jnp.maximum(h2 + b2_ref[...], 0.0)

    # Layer 3: q = W3 @ h2 + b3 -> (1, TM).  Batch is already on the lane axis,
    # so this is a lane-dense store with no transpose anywhere in the kernel.
    q = jnp.dot(w3_ref[...], h2.astype(w3_ref.dtype),
                preferred_element_type=jnp.float32)
    out_ref[...] = q + b3_ref[...]                                # (1,1) broadcast add


def pack_params(params, state_dim, dtype=jnp.bfloat16, hidden_align=128):
    """Torch-layout params -> kernel layout (feature-major, split, padded).

    Torch layout: W (out_features, in_features), b (out_features,).  The
    feature-major kernel consumes W as-is (y = W @ x).  Hidden width is
    zero-padded to a multiple of `hidden_align` (pass 256 on v6e/v7x for large
    hidden widths, 128 otherwise / on v5e).  Padding is numerically exact.
    """
    hidden_align = _round_up(int(hidden_align), 128)
    w1, b1, w2, b2, w3, b3 = params
    H = w2.shape[0]
    Hp = _round_up(H, hidden_align)
    dH = Hp - H

    w1s = jnp.pad(w1[:, :state_dim], ((0, dH), (0, 0))).astype(dtype)    # (Hp, S)
    w1a = jnp.pad(w1[:, state_dim:], ((0, dH), (0, 0))).astype(dtype)    # (Hp, A)
    b1p = jnp.pad(b1, (0, dH)).reshape(Hp, 1).astype(jnp.float32)        # (Hp, 1)
    w2p = jnp.pad(w2, ((0, dH), (0, dH))).astype(dtype)                  # (Hp, Hp)
    b2p = jnp.pad(b2, (0, dH)).reshape(Hp, 1).astype(jnp.float32)        # (Hp, 1)
    w3p = jnp.pad(w3, ((0, 0), (0, dH))).astype(dtype)                   # (1, Hp)
    b3p = b3.reshape(1, 1).astype(jnp.float32)                           # (1, 1)
    return (w1s, w1a, b1p, w2p, b2p, w3p, b3p)


def critic_forward(state, action, packed, *, tile_m=1024):
    """state: (B, S), action: (B, A) -> Q values (B, 1) in float32.

    For best performance feed state/action already in the packed compute dtype
    (e.g. bf16) from the producer; the transpose/cast below otherwise costs one
    extra XLA pass over the streamed activations.
    """
    w1s, w1a, b1, w2, b2, w3, b3 = packed
    B, S = state.shape
    A = action.shape[1]
    Hp = w2.shape[0]
    dtype = w2.dtype

    # Batch tile: always a multiple of 128 (lane-dense (1, TM) output blocks),
    # capped so large batches give >= 4 grid steps (v7x has 2 TensorCores; the
    # auto pipeline needs >= 2 steps per core to overlap DMA with compute).
    tm_cap = max(128, _round_up(int(tile_m), 128))
    tm_want = max(128, _round_up(pl.cdiv(max(B, 1), 4), 128))
    TM = min(tm_cap, tm_want)
    B_pad = _round_up(max(B, 1), TM)

    # Feature-major, lane-dense streamed inputs: (S, B_pad) / (A, B_pad).
    # Zero-padded batch columns produce junk Q values that are sliced off
    # below; never reduce over the raw (1, B_pad) output before slicing.
    state_t = jnp.pad(state, ((0, B_pad - B), (0, 0))).T.astype(dtype)
    action_t = jnp.pad(action, ((0, B_pad - B), (0, 0))).T.astype(dtype)

    grid = (B_pad // TM,)

    def const(shape):
        # Same block every grid step -> stays VMEM-resident, no re-DMA.
        return pl.BlockSpec(shape, lambda i: (0, 0))

    q = pl.pallas_call(
        critic_kernel,
        out_shape=jax.ShapeDtypeStruct((1, B_pad), jnp.float32),
        grid=grid,
        in_specs=[
            pl.BlockSpec((S, TM), lambda i: (0, i)),   # state tile  (lane-dense)
            pl.BlockSpec((A, TM), lambda i: (0, i)),   # action tile (lane-dense)
            const((Hp, S)),                            # W1_state
            const((Hp, A)),                            # W1_action
            const((Hp, 1)),                            # b1
            const((Hp, Hp)),                           # W2
            const((Hp, 1)),                            # b2
            const((1, Hp)),                            # w3
            const((1, 1)),                             # b3
        ],
        out_specs=pl.BlockSpec((1, TM), lambda i: (0, i)),   # batch on lanes
        compiler_params=pltpu.CompilerParams(
            dimension_semantics=("parallel",)),
    )(state_t, action_t, w1s, w1a, b1, w2, b2, w3, b3)

    # (1, B_pad) -> (B, 1); drop padded batch columns.
    return q.reshape(B_pad, 1)[:B]


# ----------------------------- reference & test ------------------------------

def init_params(key, state_dim, action_dim, hidden_dim):
    """PyTorch-Linear-like uniform init, torch layout: W (out, in), b (out,)."""
    dims = [(state_dim + action_dim, hidden_dim),
            (hidden_dim, hidden_dim),
            (hidden_dim, 1)]
    params = []
    for fan_in, fan_out in dims:
        key, kw, kb = jax.random.split(key, 3)
        bound = 1.0 / (fan_in ** 0.5)
        w = jax.random.uniform(kw, (fan_out, fan_in), jnp.float32, -bound, bound)
        b = jax.random.uniform(kb, (fan_out,), jnp.float32, -bound, bound)
        params.extend([w, b])
    return tuple(params)


def critic_reference(state, action, params):
    """Direct transcription of the PyTorch forward."""
    w1, b1, w2, b2, w3, b3 = params
    sa = jnp.concatenate([state, action], axis=1)
    h1 = jnp.maximum(sa @ w1.T + b1, 0.0)
    h2 = jnp.maximum(h1 @ w2.T + b2, 0.0)
    return h2 @ w3.T + b3


if __name__ == "__main__":
    batch, state_dim, action_dim, hidden_dim = 2, 16, 8, 32

    key = jax.random.PRNGKey(0)
    k_state, k_action, k_params = jax.random.split(key, 3)
    state = jax.random.normal(k_state, (batch, state_dim), jnp.float32)
    action = jax.random.normal(k_action, (batch, action_dim), jnp.float32)
    params = init_params(k_params, state_dim, action_dim, hidden_dim)

    q_ref = critic_reference(state, action, params)

    # Default path: bf16 weights/activations, f32 accumulation & biases.
    packed_bf16 = pack_params(params, state_dim)           # dtype=bfloat16 default
    q_bf16 = jax.block_until_ready(critic_forward(state, action, packed_bf16))
    assert q_bf16.shape == (batch, 1) and q_bf16.dtype == jnp.float32
    assert jnp.allclose(q_bf16, q_ref, atol=5e-2, rtol=5e-2)

    # Strict-precision path: f32 storage end-to-end.
    packed_f32 = pack_params(params, state_dim, dtype=jnp.float32)
    q_f32 = jax.block_until_ready(critic_forward(state, action, packed_f32))
    assert q_f32.shape == (batch, 1)
    assert jnp.allclose(q_f32, q_ref, atol=1e-3, rtol=1e-3)

    # TODO(synk): TD3 evaluates two critics (Q1/Q2) on the same (state, action);
    # they can share this pallas_call by adding the second critic's resident
    # weights and writing a (2, B_pad) output.  The module spec here is a
    # single Critic, so only one is implemented.

    print("KERNEL_OK")
</pallas_src>

<mosaic_0001>
module attributes {stable_mosaic.version = 11 : i64} {
  func.func @critic_kernel(%arg0: i32, %arg1: memref<16x128xbf16, #tpu.memory_space<vmem>>, %arg2: memref<8x128xbf16, #tpu.memory_space<vmem>>, %arg3: memref<128x16xbf16, #tpu.memory_space<vmem>>, %arg4: memref<128x8xbf16, #tpu.memory_space<vmem>>, %arg5: memref<128x1xf32, #tpu.memory_space<vmem>>, %arg6: memref<128x128xbf16, #tpu.memory_space<vmem>>, %arg7: memref<128x1xf32, #tpu.memory_space<vmem>>, %arg8: memref<1x128xbf16, #tpu.memory_space<vmem>>, %arg9: memref<1x1xf32, #tpu.memory_space<vmem>>, %arg10: memref<1x128xf32, #tpu.memory_space<vmem>>) attributes {dimension_semantics = [#tpu.dimension_semantics<parallel>], iteration_bounds = array<i64: 1>, scalar_prefetch = 0 : i64, scratch_operands = 0 : i64, tpu.core_type = #tpu.core_type<tc>, window_params = [{transform_indices = @transform_0, window_bounds = array<i64: 16, 128>}, {transform_indices = @transform_1, window_bounds = array<i64: 8, 128>}, {pipeline_mode = #tpu.pipeline_mode<synchronous>, transform_indices = @transform_2, window_bounds = array<i64: 128, 16>}, {pipeline_mode = #tpu.pipeline_mode<synchronous>, transform_indices = @transform_3, window_bounds = array<i64: 128, 8>}, {pipeline_mode = #tpu.pipeline_mode<synchronous>, transform_indices = @transform_4, window_bounds = array<i64: 128, 1>}, {pipeline_mode = #tpu.pipeline_mode<synchronous>, transform_indices = @transform_5, window_bounds = array<i64: 128, 128>}, {pipeline_mode = #tpu.pipeline_mode<synchronous>, transform_indices = @transform_6, window_bounds = array<i64: 128, 1>}, {pipeline_mode = #tpu.pipeline_mode<synchronous>, transform_indices = @transform_7, window_bounds = array<i64: 1, 128>}, {pipeline_mode = #tpu.pipeline_mode<synchronous>, transform_indices = @transform_8, window_bounds = array<i64: 1, 1>}, {transform_indices = @transform_9, window_bounds = array<i64: 1, 128>}]} {
    %c0 = arith.constant 0 : index
    %c0_0 = arith.constant 0 : index
    %0 = vector.load %arg3[%c0, %c0_0] : memref<128x16xbf16, #tpu.memory_space<vmem>>, vector<128x16xbf16>
    %c0_1 = arith.constant 0 : index
    %c0_2 = arith.constant 0 : index
    %1 = vector.load %arg1[%c0_1, %c0_2] : memref<16x128xbf16, #tpu.memory_space<vmem>>, vector<16x128xbf16>
    %cst = arith.constant dense<0.000000e+00> : vector<128x128xf32>
    %2 = tpu.matmul %0, %1, %cst {dimension_numbers = #tpu.dot_dimension_numbers<[1], [0], [0], [1], [0, 0, 1, 1], [], []>} : vector<128x16xbf16>, vector<16x128xbf16>, vector<128x128xf32> -> vector<128x128xf32>
    %c0_3 = arith.constant 0 : index
    %c0_4 = arith.constant 0 : index
    %3 = vector.load %arg4[%c0_3, %c0_4] : memref<128x8xbf16, #tpu.memory_space<vmem>>, vector<128x8xbf16>
    %c0_5 = arith.constant 0 : index
    %c0_6 = arith.constant 0 : index
    %4 = vector.load %arg2[%c0_5, %c0_6] : memref<8x128xbf16, #tpu.memory_space<vmem>>, vector<8x128xbf16>
    %cst_7 = arith.constant dense<0.000000e+00> : vector<128x128xf32>
    %5 = tpu.matmul %3, %4, %cst_7 {dimension_numbers = #tpu.dot_dimension_numbers<[1], [0], [0], [1], [0, 0, 1, 1], [], []>} : vector<128x8xbf16>, vector<8x128xbf16>, vector<128x128xf32> -> vector<128x128xf32>
    %6 = arith.addf %2, %5 : vector<128x128xf32>
    %c0_8 = arith.constant 0 : index
    %c0_9 = arith.constant 0 : index
    %7 = vector.load %arg5[%c0_8, %c0_9] : memref<128x1xf32, #tpu.memory_space<vmem>>, vector<128x1xf32>
    %8 = vector.broadcast %7 : vector<128x1xf32> to vector<128x128xf32>
    %9 = arith.addf %6, %8 : vector<128x128xf32>
    %cst_10 = arith.constant 0.000000e+00 : f32
    %10 = vector.broadcast %cst_10 : f32 to vector<128x128xf32>
    %11 = arith.maximumf %9, %10 : vector<128x128xf32>
    %c0_11 = arith.constant 0 : index
    %c0_12 = arith.constant 0 : index
    %12 = vector.load %arg6[%c0_11, %c0_12] : memref<128x128xbf16, #tpu.memory_space<vmem>>, vector<128x128xbf16>
    %13 = arith.truncf %11 : vector<128x128xf32> to vector<128x128xbf16>
    %cst_13 = arith.constant dense<0.000000e+00> : vector<128x128xf32>
    %14 = tpu.matmul %12, %13, %cst_13 {dimension_numbers = #tpu.dot_dimension_numbers<[1], [0], [0], [1], [0, 0, 1, 1], [], []>} : vector<128x128xbf16>, vector<128x128xbf16>, vector<128x128xf32> -> vector<128x128xf32>
    %c0_14 = arith.constant 0 : index
    %c0_15 = arith.constant 0 : index
    %15 = vector.load %arg7[%c0_14, %c0_15] : memref<128x1xf32, #tpu.memory_space<vmem>>, vector<128x1xf32>
    %16 = vector.broadcast %15 : vector<128x1xf32> to vector<128x128xf32>
    %17 = arith.addf %14, %16 : vector<128x128xf32>
    %cst_16 = arith.constant 0.000000e+00 : f32
    %18 = vector.broadcast %cst_16 : f32 to vector<128x128xf32>
    %19 = arith.maximumf %17, %18 : vector<128x128xf32>
    %c0_17 = arith.constant 0 : index
    %c0_18 = arith.constant 0 : index
    %20 = vector.load %arg8[%c0_17, %c0_18] : memref<1x128xbf16, #tpu.memory_space<vmem>>, vector<1x128xbf16>
    %21 = arith.truncf %19 : vector<128x128xf32> to vector<128x128xbf16>
    %cst_19 = arith.constant dense<0.000000e+00> : vector<1x128xf32>
    %22 = tpu.matmul %20, %21, %cst_19 {dimension_numbers = #tpu.dot_dimension_numbers<[1], [0], [0], [1], [0, 0, 1, 1], [], []>} : vector<1x128xbf16>, vector<128x128xbf16>, vector<1x128xf32> -> vector<1x128xf32>
    %c0_20 = arith.constant 0 : index
    %c0_21 = arith.constant 0 : index
    %23 = vector.load %arg9[%c0_20, %c0_21] : memref<1x1xf32, #tpu.memory_space<vmem>>, vector<1x1xf32>
    %24 = vector.broadcast %23 : vector<1x1xf32> to vector<1x128xf32>
    %25 = arith.addf %22, %24 : vector<1x128xf32>
    %c0_22 = arith.constant 0 : index
    %c0_23 = arith.constant 0 : index
    %26 = vector.load %arg10[%c0_22, %c0_23] : memref<1x128xf32, #tpu.memory_space<vmem>>, vector<1x128xf32>
    tpu.vector_store %arg10[%c0_22, %c0_23], %25 {strides = array<i32>} : memref<1x128xf32, #tpu.memory_space<vmem>>, vector<1x128xf32>,
    return
  }
  func.func @transform_0(%arg0: i32) -> (i32, i32) {
    %c0_i32 = arith.constant 0 : i32
    %c0_i32_0 = arith.constant 0 : i32
    return %c0_i32, %arg0 : i32, i32
  }
  func.func @transform_1(%arg0: i32) -> (i32, i32) {
    %c0_i32 = arith.constant 0 : i32
    %c0_i32_0 = arith.constant 0 : i32
    return %c0_i32, %arg0 : i32, i32
  }
  func.func @transform_2(%arg0: i32) -> (i32, i32) {
    %c0_i32 = arith.constant 0 : i32
    %c0_i32_0 = arith.constant 0 : i32
    %c0_i32_1 = arith.constant 0 : i32
    return %c0_i32, %c0_i32_0 : i32, i32
  }
  func.func @transform_3(%arg0: i32) -> (i32, i32) {
    %c0_i32 = arith.constant 0 : i32
    %c0_i32_0 = arith.constant 0 : i32
    %c0_i32_1 = arith.constant 0 : i32
    return %c0_i32, %c0_i32_0 : i32, i32
  }
  func.func @transform_4(%arg0: i32) -> (i32, i32) {
    %c0_i32 = arith.constant 0 : i32
    %c0_i32_0 = arith.constant 0 : i32
    %c0_i32_1 = arith.constant 0 : i32
    return %c0_i32, %c0_i32_0 : i32, i32
  }
  func.func @transform_5(%arg0: i32) -> (i32, i32) {
    %c0_i32 = arith.constant 0 : i32
    %c0_i32_0 = arith.constant 0 : i32
    %c0_i32_1 = arith.constant 0 : i32
    return %c0_i32, %c0_i32_0 : i32, i32
  }
  func.func @transform_6(%arg0: i32) -> (i32, i32) {
    %c0_i32 = arith.constant 0 : i32
    %c0_i32_0 = arith.constant 0 : i32
    %c0_i32_1 = arith.constant 0 : i32
    return %c0_i32, %c0_i32_0 : i32, i32
  }
  func.func @transform_7(%arg0: i32) -> (i32, i32) {
    %c0_i32 = arith.constant 0 : i32
    %c0_i32_0 = arith.constant 0 : i32
    %c0_i32_1 = arith.constant 0 : i32
    return %c0_i32, %c0_i32_0 : i32, i32
  }
  func.func @transform_8(%arg0: i32) -> (i32, i32) {
    %c0_i32 = arith.constant 0 : i32
    %c0_i32_0 = arith.constant 0 : i32
    %c0_i32_1 = arith.constant 0 : i32
    return %c0_i32, %c0_i32_0 : i32, i32
  }
  func.func @transform_9(%arg0: i32) -> (i32, i32) {
    %c0_i32 = arith.constant 0 : i32
    %c0_i32_0 = arith.constant 0 : i32
    return %c0_i32, %arg0 : i32, i32
  }
}

</mosaic_0001>

<llo_original>
// kernel: tpu_custom_call.1
$region0: #{tpu_custom_call.1}
  #allocation0 [shape = 'u32[]', space=smem, size = 0x4, offset = 0x4, fixed_abs, tag = 'smem constant byte address 0x4 - core index']
  #allocation1 [shape = 'u32[144,128]{1,0:T(1,128)}', space=vmem, size = 0x12000, scoped, tag = 'internal scratch']
  #allocation2 [shape = 'f32[1,1]{1,0:T(1,128)S(1)}', space=vmem, size = 0x200, scoped, tag = 'scoped memory for tpu_custom_call.1']
  %s0 = inlined_call_operand.vmem [shape: bf16[16,128], index: 0, kind: input, shape index: {}]
  %s1 = inlined_call_operand.vmem [shape: bf16[8,128], index: 1, kind: input, shape index: {}]
  %s2 = inlined_call_operand.vmem [shape: bf16[128,16], index: 2, kind: input, shape index: {}]
  %s3 = inlined_call_operand.vmem [shape: bf16[128,8], index: 3, kind: input, shape index: {}]
  %s4 = inlined_call_operand.vmem [shape: f32[128,1], index: 4, kind: input, shape index: {}]
  %s5 = inlined_call_operand.vmem [shape: bf16[128,128], index: 5, kind: input, shape index: {}]
  %s6 = inlined_call_operand.vmem [shape: f32[128,1], index: 6, kind: input, shape index: {}]
  %s7 = inlined_call_operand.vmem [shape: bf16[1,128], index: 7, kind: input, shape index: {}]
  %s8 = inlined_call_operand.<no memory space> [shape: f32[1,1], index: 8, kind: input, shape index: {}]
  %s9 = inlined_call_operand.hbm [shape: f32[1,128], index: 9, kind: output, shape index: {}]
  %s10 = sld [smem:[#allocation0]]
  $region46: #{tpu_custom_call.1} parent=0
    _
  %s12 = ssub.s32 1, %s10
  %s13 = scalar_select 0, %s12, %s10
  %v14 = vstv %s8
  %15 = vst [vmem:[#allocation2] sm:$0x1] %v14
  $region1: #{tpu_custom_call.1} parent=0
    #allocation3 [shape = 'u8[512]{0}', space=vmem, size = 0x400, scoped, tag = 'output window, operand 0, single buffered']
    #allocation4 [shape = 's32[1]{0}', space=sflag, size = 0x4, scoped, tag = 'scoped memory for tpu_custom_call.1']
    %16 = vsyncpa [#allocation4], 0
    // Predicated region
    $region2: #{tpu_custom_call.1} parent=1 // pred_check
      _
    $region3: #{tpu_custom_call.1} parent=1 // pred_check_branch
      %18 = sbr.rel (0) target = $region5
    $region4: #{tpu_custom_call.1} parent=1 // pred_region
      _
    $region5: #{tpu_custom_call.1} parent=1 // pred_fallthru
      _
    // Predicated region
    $region6: #{tpu_custom_call.1} parent=1 // pred_check
      _
    $region7: #{tpu_custom_call.1} parent=1 // pred_check_branch
      %20 = sbr.rel (0) target = $region9
    $region8: #{tpu_custom_call.1} parent=1 // pred_region
      _
    $region9: #{tpu_custom_call.1} parent=1 // pred_fallthru
      _
    // Predicated region
    $region10: #{tpu_custom_call.1} parent=1 // pred_check
      _
    $region11: #{tpu_custom_call.1} parent=1 // pred_check_branch
      %22 = sbr.rel (0) target = $region13
    $region12: #{tpu_custom_call.1} parent=1 // pred_region
      _
    $region13: #{tpu_custom_call.1} parent=1 // pred_fallthru
      _
    // Predicated region
    $region14: #{tpu_custom_call.1} parent=1 // pred_check
      _
    $region15: #{tpu_custom_call.1} parent=1 // pred_check_branch
      %24 = sbr.rel (0) target = $region17
    $region16: #{tpu_custom_call.1} parent=1 // pred_region
      _
    $region17: #{tpu_custom_call.1} parent=1 // pred_fallthru
      _
    // Predicated region
    $region18: #{tpu_custom_call.1} parent=1 // pred_check
      _
    $region19: #{tpu_custom_call.1} parent=1 // pred_check_branch
      %26 = sbr.rel (0) target = $region21
    $region20: #{tpu_custom_call.1} parent=1 // pred_region
      _
    $region21: #{tpu_custom_call.1} parent=1 // pred_fallthru
      _
    // Predicated region
    $region22: #{tpu_custom_call.1} parent=1 // pred_check
      _
    $region23: #{tpu_custom_call.1} parent=1 // pred_check_branch
      %28 = sbr.rel (0) target = $region25
    $region24: #{tpu_custom_call.1} parent=1 // pred_region
      _
    $region25: #{tpu_custom_call.1} parent=1 // pred_fallthru
      _
    // Predicated region
    $region26: #{tpu_custom_call.1} parent=1 // pred_check
      _
    $region27: #{tpu_custom_call.1} parent=1 // pred_check_branch
      %30 = sbr.rel (0) target = $region29
    $region28: #{tpu_custom_call.1} parent=1 // pred_region
      _
    $region29: #{tpu_custom_call.1} parent=1 // pred_fallthru
      _
    // Predicated region
    $region30: #{tpu_custom_call.1} parent=1 // pred_check
      _
    $region31: #{tpu_custom_call.1} parent=1 // pred_check_branch
      %32 = sbr.rel (0) target = $region33
    $region32: #{tpu_custom_call.1} parent=1 // pred_region
      _
    $region33: #{tpu_custom_call.1} parent=1 // pred_fallthru
      _
    // Predicated region
    $region34: #{tpu_custom_call.1} parent=1 // pred_check
      _
    $region35: #{tpu_custom_call.1} parent=1 // pred_check_branch
      %34 = sbr.rel (0) target = $region37
    $region36: #{tpu_custom_call.1} parent=1 // pred_region
      _
    $region37: #{tpu_custom_call.1} parent=1 // pred_fallthru
      _
    %v36 = vld [vmem:[%s2] sm:$0xf]
    %v37 = vld [vmem:[%s2 + $0x4] sm:$0xf]
    %v38 = vld [vmem:[%s2 + $0x8] sm:$0xf]
    %v39 = vld [vmem:[%s2 + $0xc] sm:$0xf]
    %v40 = vld [vmem:[%s2 + $0x10] sm:$0xf]
    %v41 = vld [vmem:[%s2 + $0x14] sm:$0xf]
    %v42 = vld [vmem:[%s2 + $0x18] sm:$0xf]
    %v43 = vld [vmem:[%s2 + $0x1c] sm:$0xf]
    %v44 = vld [vmem:[%s2 + $0x20] sm:$0xf]
    %v45 = vld [vmem:[%s2 + $0x24] sm:$0xf]
    %v46 = vld [vmem:[%s2 + $0x28] sm:$0xf]
    %v47 = vld [vmem:[%s2 + $0x2c] sm:$0xf]
    %v48 = vld [vmem:[%s2 + $0x30] sm:$0xf]
    %v49 = vld [vmem:[%s2 + $0x34] sm:$0xf]
    %v50 = vld [vmem:[%s2 + $0x38] sm:$0xf]
    %v51 = vld [vmem:[%s2 + $0x3c] sm:$0xf]
    %v52 = vld [vmem:[%s0] sm:$0xf]
    %v53 = vld [vmem:[%s0 + $0x4] sm:$0xf]
    %v54 = vld [vmem:[%s3] sm:$0xf]
    %v55 = vld [vmem:[%s3 + $0x4] sm:$0xf]
    %v56 = vld [vmem:[%s3 + $0x8] sm:$0xf]
    %v57 = vld [vmem:[%s3 + $0xc] sm:$0xf]
    %v58 = vld [vmem:[%s3 + $0x10] sm:$0xf]
    %v59 = vld [vmem:[%s3 + $0x14] sm:$0xf]
    %v60 = vld [vmem:[%s3 + $0x18] sm:$0xf]
    %v61 = vld [vmem:[%s3 + $0x1c] sm:$0xf]
    %v62 = vld [vmem:[%s3 + $0x20] sm:$0xf]
    %v63 = vld [vmem:[%s3 + $0x24] sm:$0xf]
    %v64 = vld [vmem:[%s3 + $0x28] sm:$0xf]
    %v65 = vld [vmem:[%s3 + $0x2c] sm:$0xf]
    %v66 = vld [vmem:[%s3 + $0x30] sm:$0xf]
    %v67 = vld [vmem:[%s3 + $0x34] sm:$0xf]
    %v68 = vld [vmem:[%s3 + $0x38] sm:$0xf]
    %v69 = vld [vmem:[%s3 + $0x3c] sm:$0xf]
    %v70 = vld [vmem:[%s1] sm:$0xf]
    %v87 = vunpack.c.l.b16 %v54
    %v88 = vunpack.c.l.b16 %v55
    %v89 = vunpack.c.l.b16 %v56
    %v90 = vunpack.c.l.b16 %v57
    %v91 = vunpack.c.l.b16 %v58
    %v92 = vunpack.c.l.b16 %v59
    %v93 = vunpack.c.l.b16 %v60
    %v94 = vunpack.c.l.b16 %v61
    %v95 = vunpack.c.l.b16 %v62
    %v96 = vunpack.c.l.b16 %v63
    %v97 = vunpack.c.l.b16 %v64
    %v98 = vunpack.c.l.b16 %v65
    %v99 = vunpack.c.l.b16 %v66
    %v100 = vunpack.c.l.b16 %v67
    %v101 = vunpack.c.l.b16 %v68
    %v102 = vunpack.c.l.b16 %v69
    %v103 = vpack.c.b16 %v88, %v87
    %v104 = vpack.c.b16 %v90, %v89
    %v105 = vpack.c.b16 %v92, %v91
    %v106 = vpack.c.b16 %v94, %v93
    %v107 = vpack.c.b16 %v96, %v95
    %v108 = vpack.c.b16 %v98, %v97
    %v109 = vpack.c.b16 %v100, %v99
    %v110 = vpack.c.b16 %v102, %v101
    %vm111 = vcmask 64512
    %v113 = vsel %vm111, %v103, 0
    %v116 = vsel %vm111, %v104, 0
    %v119 = vsel %vm111, %v105, 0
    %v122 = vsel %vm111, %v106, 0
    %v125 = vsel %vm111, %v107, 0
    %v128 = vsel %vm111, %v108, 0
    %v131 = vsel %vm111, %v109, 0
    %v134 = vsel %vm111, %v110, 0
    %vm136 = vcmask 1043456
    %v138 = vsel %vm136, %v70, 0
    %140 = vmatprep.subr.bf16.mxu0 0
    %141 = vmatpush1.bf16.msra.mxu0 0
    %142 = vmatprep.subr.bf16.mxu0 0
    %143 = vmatpush1.bf16.msra.mxu0 0
    %144 = vmatprep.subr.bf16.mxu0 0
    %145 = vmatpush1.bf16.msra.mxu0 0
    %146 = vmatprep.subr.bf16.mxu0 0
    %147 = vmatpush1.bf16.msra.mxu0 0
    %148 = vmatprep.subr.bf16.mxu0 0
    %149 = vmatpush1.bf16.msra.mxu0 0
    %150 = vmatprep.subr.bf16.mxu0 0
    %151 = vmatpush1.bf16.msra.mxu0 0
    %152 = vmatprep.subr.bf16.mxu0 0
    %153 = vmatpush1.bf16.msra.mxu0 0
    %154 = vmatprep.subr.bf16.mxu0 0
    %155 = vmatpush1.bf16.msra.mxu0 %v138
    %156 = vmatprep.subr.bf16.mxu0 0
    %157 = vmatpush2.bf16.msra.mxu0 0
    %158 = vmatprep.subr.bf16.mxu0 0
    %159 = vmatpush2.bf16.msra.mxu0 0
    %160 = vmatprep.subr.bf16.mxu0 0
    %161 = vmatpush2.bf16.msra.mxu0 0
    %162 = vmatprep.subr.bf16.mxu0 0
    %163 = vmatpush2.bf16.msra.mxu0 0
    %164 = vmatprep.subr.bf16.mxu0 0
    %165 = vmatpush2.bf16.msra.mxu0 0
    %166 = vmatprep.subr.bf16.mxu0 0
    %167 = vmatpush2.bf16.msra.mxu0 0
    %168 = vmatprep.subr.bf16.mxu0 0
    %169 = vmatpush2.bf16.msra.mxu0 0
    %170 = vmatprep.subr.bf16.mxu0 0
    %171 = vmatpush2.bf16.msra.mxu0 0
    %172 = vmatprep.mubr.bf16.mxu0 0
    %173 = vmatmul.mubr.bf16.gmra.mxu0 %v113
    %v174 = vpop.f32.mrf.mxu0
    %v175 = vadd.f32 0.0, %v174
    %v176 = vpop.f32.mrf.mxu0
    %v177 = vpop.f32.mrf.mxu0
    %v178 = vadd.f32 0.0, %v177
    %v179 = vpop.f32.mrf.mxu0
    %180 = vmatprep.mubr.bf16.mxu0 0
    %181 = vmatmul.mubr.bf16.gmra.mxu0 %v116
    %v182 = vpop.f32.mrf.mxu0
    %v183 = vadd.f32 0.0, %v182
    %v184 = vpop.f32.mrf.mxu0
    %v185 = vpop.f32.mrf.mxu0
    %v186 = vadd.f32 0.0, %v185
    %v187 = vpop.f32.mrf.mxu0
    %188 = vmatprep.mubr.bf16.mxu0 0
    %189 = vmatmul.mubr.bf16.gmra.mxu0 %v119
    %v190 = vpop.f32.mrf.mxu0
    %v191 = vadd.f32 0.0, %v190
    %v192 = vpop.f32.mrf.mxu0
    %v193 = vpop.f32.mrf.mxu0
    %v194 = vadd.f32 0.0, %v193
    %v195 = vpop.f32.mrf.mxu0
    %196 = vmatprep.mubr.bf16.mxu0 0
    %197 = vmatmul.mubr.bf16.gmra.mxu0 %v122
    %v198 = vpop.f32.mrf.mxu0
    %v199 = vadd.f32 0.0, %v198
    %v200 = vpop.f32.mrf.mxu0
    %v201 = vpop.f32.mrf.mxu0
    %v202 = vadd.f32 0.0, %v201
    %v203 = vpop.f32.mrf.mxu0
    %204 = vmatprep.mubr.bf16.mxu0 0
    %205 = vmatmul.mubr.bf16.gmra.mxu0 %v125
    %v206 = vpop.f32.mrf.mxu0
    %v207 = vadd.f32 0.0, %v206
    %v208 = vpop.f32.mrf.mxu0
    %v209 = vpop.f32.mrf.mxu0
    %v210 = vadd.f32 0.0, %v209
    %v211 = vpop.f32.mrf.mxu0
    %212 = vmatprep.mubr.bf16.mxu0 0
    %213 = vmatmul.mubr.bf16.gmra.mxu0 %v128
    %v214 = vpop.f32.mrf.mxu0
    %v215 = vadd.f32 0.0, %v214
    %v216 = vpop.f32.mrf.mxu0
    %v217 = vpop.f32.mrf.mxu0
    %v218 = vadd.f32 0.0, %v217
    %v219 = vpop.f32.mrf.mxu0
    %220 = vmatprep.mubr.bf16.mxu0 0
    %221 = vmatmul.mubr.bf16.gmra.mxu0 %v131
    %v222 = vpop.f32.mrf.mxu0
    %v223 = vadd.f32 0.0, %v222
    %v224 = vpop.f32.mrf.mxu0
    %v225 = vpop.f32.mrf.mxu0
    %v226 = vadd.f32 0.0, %v225
    %v227 = vpop.f32.mrf.mxu0
    %228 = vmatprep.mubr.bf16.mxu0 0
    %229 = vmatmul.mubr.bf16.gmra.mxu0 %v134
    %v230 = vpop.f32.mrf.mxu0
    %v231 = vadd.f32 0.0, %v230
    %v232 = vpop.f32.mrf.mxu0
    %v233 = vpop.f32.mrf.mxu0
    %v234 = vadd.f32 0.0, %v233
    %v235 = vpop.f32.mrf.mxu0
    %236 = vdwg.mxu0
    %v253 = vunpack.c.l.b16 %v36
    %v254 = vunpack.c.l.b16 %v37
    %v255 = vunpack.c.l.b16 %v38
    %v256 = vunpack.c.l.b16 %v39
    %v257 = vunpack.c.l.b16 %v40
    %v258 = vunpack.c.l.b16 %v41
    %v259 = vunpack.c.l.b16 %v42
    %v260 = vunpack.c.l.b16 %v43
    %v261 = vunpack.c.l.b16 %v44
    %v262 = vunpack.c.l.b16 %v45
    %v263 = vunpack.c.l.b16 %v46
    %v264 = vunpack.c.l.b16 %v47
    %v265 = vunpack.c.l.b16 %v48
    %v266 = vunpack.c.l.b16 %v49
    %v267 = vunpack.c.l.b16 %v50
    %v268 = vunpack.c.l.b16 %v51
    %v269 = vpack.c.b16 %v254, %v253
    %v270 = vpack.c.b16 %v256, %v255
    %v271 = vpack.c.b16 %v258, %v257
    %v272 = vpack.c.b16 %v260, %v259
    %v273 = vpack.c.b16 %v262, %v261
    %v274 = vpack.c.b16 %v264, %v263
    %v275 = vpack.c.b16 %v266, %v265
    %v276 = vpack.c.b16 %v268, %v267
    %v279 = vunpack.c.l.b16 %v52
    %v280 = vunpack.c.l.b16 %v53
    %v281 = vpack.c.b16 %v280, %v279
    %vm283 = vcmask 130048
    %v285 = vsel %vm283, %v269, 0
    %v288 = vsel %vm283, %v270, 0
    %v291 = vsel %vm283, %v271, 0
    %v294 = vsel %vm283, %v272, 0
    %v297 = vsel %vm283, %v273, 0
    %v300 = vsel %vm283, %v274, 0
    %v303 = vsel %vm283, %v275, 0
    %v306 = vsel %vm283, %v276, 0
    %308 = vmatprep.subr.bf16.mxu0 0
    %309 = vmatpush1.bf16.msra.mxu0 0
    %310 = vmatprep.subr.bf16.mxu0 0
    %311 = vmatpush1.bf16.msra.mxu0 0
    %312 = vmatprep.subr.bf16.mxu0 0
    %313 = vmatpush1.bf16.msra.mxu0 0
    %314 = vmatprep.subr.bf16.mxu0 0
    %315 = vmatpush1.bf16.msra.mxu0 0
    %316 = vmatprep.subr.bf16.mxu0 0
    %317 = vmatpush1.bf16.msra.mxu0 0
    %318 = vmatprep.subr.bf16.mxu0 0
    %319 = vmatpush1.bf16.msra.mxu0 0
    %320 = vmatprep.subr.bf16.mxu0 0
    %321 = vmatpush1.bf16.msra.mxu0 0
    %322 = vmatprep.subr.bf16.mxu0 0
    %323 = vmatpush1.bf16.msra.mxu0 %v281
    %324 = vmatprep.subr.bf16.mxu0 0
    %325 = vmatpush2.bf16.msra.mxu0 0
    %326 = vmatprep.subr.bf16.mxu0 0
    %327 = vmatpush2.bf16.msra.mxu0 0
    %328 = vmatprep.subr.bf16.mxu0 0
    %329 = vmatpush2.bf16.msra.mxu0 0
    %330 = vmatprep.subr.bf16.mxu0 0
    %331 = vmatpush2.bf16.msra.mxu0 0
    %332 = vmatprep.subr.bf16.mxu0 0
    %333 = vmatpush2.bf16.msra.mxu0 0
    %334 = vmatprep.subr.bf16.mxu0 0
    %335 = vmatpush2.bf16.msra.mxu0 0
    %336 = vmatprep.subr.bf16.mxu0 0
    %337 = vmatpush2.bf16.msra.mxu0 0
    %338 = vmatprep.subr.bf16.mxu0 0
    %339 = vmatpush2.bf16.msra.mxu0 0
    %340 = vmatprep.mubr.bf16.mxu0 0
    %341 = vmatmul.mubr.bf16.gmra.mxu0 %v285
    %v342 = vpop.f32.mrf.mxu0
    %v343 = vadd.f32 %v175, %v342
    %v344 = vpop.f32.mrf.mxu0
    %v345 = vpop.f32.mrf.mxu0
    %v346 = vadd.f32 %v178, %v345
    %v347 = vpop.f32.mrf.mxu0
    %348 = vmatprep.mubr.bf16.mxu0 0
    %349 = vmatmul.mubr.bf16.gmra.mxu0 %v288
    %v350 = vpop.f32.mrf.mxu0
    %v351 = vadd.f32 %v183, %v350
    %v352 = vpop.f32.mrf.mxu0
    %v353 = vpop.f32.mrf.mxu0
    %v354 = vadd.f32 %v186, %v353
    %v355 = vpop.f32.mrf.mxu0
    %356 = vmatprep.mubr.bf16.mxu0 0
    %357 = vmatmul.mubr.bf16.gmra.mxu0 %v291
    %v358 = vpop.f32.mrf.mxu0
    %v359 = vadd.f32 %v191, %v358
    %v360 = vpop.f32.mrf.mxu0
    %v361 = vpop.f32.mrf.mxu0
    %v362 = vadd.f32 %v194, %v361
    %v363 = vpop.f32.mrf.mxu0
    %364 = vmatprep.mubr.bf16.mxu0 0
    %365 = vmatmul.mubr.bf16.gmra.mxu0 %v294
    %v366 = vpop.f32.mrf.mxu0
    %v367 = vadd.f32 %v199, %v366
    %v368 = vpop.f32.mrf.mxu0
    %v369 = vpop.f32.mrf.mxu0
    %v370 = vadd.f32 %v202, %v369
    %v371 = vpop.f32.mrf.mxu0
    %372 = vmatprep.mubr.bf16.mxu0 0
    %373 = vmatmul.mubr.bf16.gmra.mxu0 %v297
    %v374 = vpop.f32.mrf.mxu0
    %v375 = vadd.f32 %v207, %v374
    %v376 = vpop.f32.mrf.mxu0
    %v377 = vpop.f32.mrf.mxu0
    %v378 = vadd.f32 %v210, %v377
    %v379 = vpop.f32.mrf.mxu0
    %380 = vmatprep.mubr.bf16.mxu0 0
    %381 = vmatmul.mubr.bf16.gmra.mxu0 %v300
    %v382 = vpop.f32.mrf.mxu0
    %v383 = vadd.f32 %v215, %v382
    %v384 = vpop.f32.mrf.mxu0
    %v385 = vpop.f32.mrf.mxu0
    %v386 = vadd.f32 %v218, %v385
    %v387 = vpop.f32.mrf.mxu0
    %388 = vmatprep.mubr.bf16.mxu0 0
    %389 = vmatmul.mubr.bf16.gmra.mxu0 %v303
    %v390 = vpop.f32.mrf.mxu0
    %v391 = vadd.f32 %v223, %v390
    %v392 = vpop.f32.mrf.mxu0
    %v393 = vpop.f32.mrf.mxu0
    %v394 = vadd.f32 %v226, %v393
    %v395 = vpop.f32.mrf.mxu0
    %396 = vmatprep.mubr.bf16.mxu0 0
    %397 = vmatmul.mubr.bf16.gmra.mxu0 %v306
    %v398 = vpop.f32.mrf.mxu0
    %v399 = vadd.f32 %v231, %v398
    %v400 = vpop.f32.mrf.mxu0
    %v401 = vpop.f32.mrf.mxu0
    %v402 = vadd.f32 %v234, %v401
    %v403 = vpop.f32.mrf.mxu0
    %404 = vdwg.mxu0
    %v405 = vld [vmem:[%s4] sm:$0xff]
    %v406 = vld [vmem:[%s4 + $0x8] sm:$0xff]
    %v407 = vld [vmem:[%s4 + $0x10] sm:$0xff]
    %v408 = vld [vmem:[%s4 + $0x18] sm:$0xff]
    %v409 = vld [vmem:[%s4 + $0x20] sm:$0xff]
    %v410 = vld [vmem:[%s4 + $0x28] sm:$0xff]
    %v411 = vld [vmem:[%s4 + $0x30] sm:$0xff]
    %v412 = vld [vmem:[%s4 + $0x38] sm:$0xff]
    %v413 = vld [vmem:[%s4 + $0x40] sm:$0xff]
    %v414 = vld [vmem:[%s4 + $0x48] sm:$0xff]
    %v415 = vld [vmem:[%s4 + $0x50] sm:$0xff]
    %v416 = vld [vmem:[%s4 + $0x58] sm:$0xff]
    %v417 = vld [vmem:[%s4 + $0x60] sm:$0xff]
    %v418 = vld [vmem:[%s4 + $0x68] sm:$0xff]
    %v419 = vld [vmem:[%s4 + $0x70] sm:$0xff]
    %v420 = vld [vmem:[%s4 + $0x78] sm:$0xff]
    %422 = vset.pattern.permute.xlu0 0
    %423 = vperm.xlu0 %422, %v405
    %v424 = vpop.permute.xlu0 %423
    %427 = vset.pattern.permute.xlu0 0
    %428 = vperm.xlu0 %427, %v406
    %v429 = vpop.permute.xlu0 %428
    %432 = vset.pattern.permute.xlu0 0
    %433 = vperm.xlu0 %432, %v407
    %v434 = vpop.permute.xlu0 %433
    %437 = vset.pattern.permute.xlu0 0
    %438 = vperm.xlu0 %437, %v408
    %v439 = vpop.permute.xlu0 %438
    %442 = vset.pattern.permute.xlu0 0
    %443 = vperm.xlu0 %442, %v409
    %v444 = vpop.permute.xlu0 %443
    %447 = vset.pattern.permute.xlu0 0
    %448 = vperm.xlu0 %447, %v410
    %v449 = vpop.permute.xlu0 %448
    %452 = vset.pattern.permute.xlu0 0
    %453 = vperm.xlu0 %452, %v411
    %v454 = vpop.permute.xlu0 %453
    %457 = vset.pattern.permute.xlu0 0
    %458 = vperm.xlu0 %457, %v412
    %v459 = vpop.permute.xlu0 %458
    %462 = vset.pattern.permute.xlu0 0
    %463 = vperm.xlu0 %462, %v413
    %v464 = vpop.permute.xlu0 %463
    %467 = vset.pattern.permute.xlu0 0
    %468 = vperm.xlu0 %467, %v414
    %v469 = vpop.permute.xlu0 %468
    %472 = vset.pattern.permute.xlu0 0
    %473 = vperm.xlu0 %472, %v415
    %v474 = vpop.permute.xlu0 %473
    %477 = vset.pattern.permute.xlu0 0
    %478 = vperm.xlu0 %477, %v416
    %v479 = vpop.permute.xlu0 %478
    %482 = vset.pattern.permute.xlu0 0
    %483 = vperm.xlu0 %482, %v417
    %v484 = vpop.permute.xlu0 %483
    %487 = vset.pattern.permute.xlu0 0
    %488 = vperm.xlu0 %487, %v418
    %v489 = vpop.permute.xlu0 %488
    %492 = vset.pattern.permute.xlu0 0
    %493 = vperm.xlu0 %492, %v419
    %v494 = vpop.permute.xlu0 %493
    %497 = vset.pattern.permute.xlu0 0
    %498 = vperm.xlu0 %497, %v420
    %v499 = vpop.permute.xlu0 %498
    %v501 = vadd.f32 %v343, %v424
    %v502 = vadd.f32 %v346, %v429
    %v503 = vadd.f32 %v351, %v434
    %v504 = vadd.f32 %v354, %v439
    %v505 = vadd.f32 %v359, %v444
    %v506 = vadd.f32 %v362, %v449
    %v507 = vadd.f32 %v367, %v454
    %v508 = vadd.f32 %v370, %v459
    %v509 = vadd.f32 %v375, %v464
    %v510 = vadd.f32 %v378, %v469
    %v511 = vadd.f32 %v383, %v474
    %v512 = vadd.f32 %v386, %v479
    %v513 = vadd.f32 %v391, %v484
    %v514 = vadd.f32 %v394, %v489
    %v515 = vadd.f32 %v399, %v494
    %v516 = vadd.f32 %v402, %v499
    %v517 = vmax.f32 %v501, 0.0
    %v518 = vmax.f32 %v502, 0.0
    %v519 = vmax.f32 %v503, 0.0
    %v520 = vmax.f32 %v504, 0.0
    %v521 = vmax.f32 %v505, 0.0
    %v522 = vmax.f32 %v506, 0.0
    %v523 = vmax.f32 %v507, 0.0
    %v524 = vmax.f32 %v508, 0.0
    %v525 = vmax.f32 %v509, 0.0
    %v526 = vmax.f32 %v510, 0.0
    %v527 = vmax.f32 %v511, 0.0
    %v528 = vmax.f32 %v512, 0.0
    %v529 = vmax.f32 %v513, 0.0
    %v530 = vmax.f32 %v514, 0.0
    %v531 = vmax.f32 %v515, 0.0
    %v532 = vmax.f32 %v516, 0.0
    %v533 = vld [vmem:[%s5] sm:$0xf]
    %v534 = vld [vmem:[%s5 + $0x4] sm:$0xf]
    %v535 = vld [vmem:[%s5 + $0x8] sm:$0xf]
    %v536 = vld [vmem:[%s5 + $0xc] sm:$0xf]
    %v537 = vld [vmem:[%s5 + $0x10] sm:$0xf]
    %v538 = vld [vmem:[%s5 + $0x14] sm:$0xf]
    %v539 = vld [vmem:[%s5 + $0x18] sm:$0xf]
    %v540 = vld [vmem:[%s5 + $0x1c] sm:$0xf]
    %v541 = vld [vmem:[%s5 + $0x20] sm:$0xf]
    %v542 = vld [vmem:[%s5 + $0x24] sm:$0xf]
    %v543 = vld [vmem:[%s5 + $0x28] sm:$0xf]
    %v544 = vld [vmem:[%s5 + $0x2c] sm:$0xf]
    %v545 = vld [vmem:[%s5 + $0x30] sm:$0xf]
    %v546 = vld [vmem:[%s5 + $0x34] sm:$0xf]
    %v547 = vld [vmem:[%s5 + $0x38] sm:$0xf]
    %v548 = vld [vmem:[%s5 + $0x3c] sm:$0xf]
    %v549 = vpack.c.bf16 %v518, %v517
    %v550 = vpack.c.bf16 %v520, %v519
    %v551 = vpack.c.bf16 %v522, %v521
    %v552 = vpack.c.bf16 %v524, %v523
    %v553 = vpack.c.bf16 %v526, %v525
    %v554 = vpack.c.bf16 %v528, %v527
    %v555 = vpack.c.bf16 %v530, %v529
    %v556 = vpack.c.bf16 %v532, %v531
    %v557 = vld [vmem:[%s6] sm:$0xff]
    %v558 = vld [vmem:[%s6 + $0x8] sm:$0xff]
    %v559 = vld [vmem:[%s6 + $0x10] sm:$0xff]
    %v560 = vld [vmem:[%s6 + $0x18] sm:$0xff]
    %v561 = vld [vmem:[%s6 + $0x20] sm:$0xff]
    %v562 = vld [vmem:[%s6 + $0x28] sm:$0xff]
    %v563 = vld [vmem:[%s6 + $0x30] sm:$0xff]
    %v564 = vld [vmem:[%s6 + $0x38] sm:$0xff]
    %v565 = vld [vmem:[%s6 + $0x40] sm:$0xff]
    %v566 = vld [vmem:[%s6 + $0x48] sm:$0xff]
    %v567 = vld [vmem:[%s6 + $0x50] sm:$0xff]
    %v568 = vld [vmem:[%s6 + $0x58] sm:$0xff]
    %v569 = vld [vmem:[%s6 + $0x60] sm:$0xff]
    %v570 = vld [vmem:[%s6 + $0x68] sm:$0xff]
    %v571 = vld [vmem:[%s6 + $0x70] sm:$0xff]
    %v572 = vld [vmem:[%s6 + $0x78] sm:$0xff]
    %574 = vset.pattern.permute.xlu0 0
    %575 = vperm.xlu0 %574, %v557
    %v576 = vpop.permute.xlu0 %575
    %579 = vset.pattern.permute.xlu0 0
    %580 = vperm.xlu0 %579, %v558
    %v581 = vpop.permute.xlu0 %580
    %584 = vset.pattern.permute.xlu0 0
    %585 = vperm.xlu0 %584, %v559
    %v586 = vpop.permute.xlu0 %585
    %589 = vset.pattern.permute.xlu0 0
    %590 = vperm.xlu0 %589, %v560
    %v591 = vpop.permute.xlu0 %590
    %594 = vset.pattern.permute.xlu0 0
    %595 = vperm.xlu0 %594, %v561
    %v596 = vpop.permute.xlu0 %595
    %599 = vset.pattern.permute.xlu0 0
    %600 = vperm.xlu0 %599, %v562
    %v601 = vpop.permute.xlu0 %600
    %604 = vset.pattern.permute.xlu0 0
    %605 = vperm.xlu0 %604, %v563
    %v606 = vpop.permute.xlu0 %605
    %609 = vset.pattern.permute.xlu0 0
    %610 = vperm.xlu0 %609, %v564
    %v611 = vpop.permute.xlu0 %610
    %614 = vset.pattern.permute.xlu0 0
    %615 = vperm.xlu0 %614, %v565
    %v616 = vpop.permute.xlu0 %615
    %619 = vset.pattern.permute.xlu0 0
    %620 = vperm.xlu0 %619, %v566
    %v621 = vpop.permute.xlu0 %620
    %624 = vset.pattern.permute.xlu0 0
    %625 = vperm.xlu0 %624, %v567
    %v626 = vpop.permute.xlu0 %625
    %629 = vset.pattern.permute.xlu0 0
    %630 = vperm.xlu0 %629, %v568
    %v631 = vpop.permute.xlu0 %630
    %634 = vset.pattern.permute.xlu0 0
    %635 = vperm.xlu0 %634, %v569
    %v636 = vpop.permute.xlu0 %635
    %639 = vset.pattern.permute.xlu0 0
    %640 = vperm.xlu0 %639, %v570
    %v641 = vpop.permute.xlu0 %640
    %644 = vset.pattern.permute.xlu0 0
    %645 = vperm.xlu0 %644, %v571
    %v646 = vpop.permute.xlu0 %645
    %649 = vset.pattern.permute.xlu0 0
    %650 = vperm.xlu0 %649, %v572
    %v651 = vpop.permute.xlu0 %650
    %v669 = vunpack.c.l.b16 %v533
    %v670 = vunpack.c.l.b16 %v534
    %v671 = vunpack.c.l.b16 %v535
    %v672 = vunpack.c.l.b16 %v536
    %v673 = vunpack.c.l.b16 %v537
    %v674 = vunpack.c.l.b16 %v538
    %v675 = vunpack.c.l.b16 %v539
    %v676 = vunpack.c.l.b16 %v540
    %v677 = vunpack.c.l.b16 %v541
    %v678 = vunpack.c.l.b16 %v542
    %v679 = vunpack.c.l.b16 %v543
    %v680 = vunpack.c.l.b16 %v544
    %v681 = vunpack.c.l.b16 %v545
    %v682 = vunpack.c.l.b16 %v546
    %v683 = vunpack.c.l.b16 %v547
    %v684 = vunpack.c.l.b16 %v548
    %v685 = vpack.c.b16 %v670, %v669
    %v686 = vpack.c.b16 %v672, %v671
    %v687 = vpack.c.b16 %v674, %v673
    %v688 = vpack.c.b16 %v676, %v675
    %v689 = vpack.c.b16 %v678, %v677
    %v690 = vpack.c.b16 %v680, %v679
    %v691 = vpack.c.b16 %v682, %v681
    %v692 = vpack.c.b16 %v684, %v683
    %701 = vmatprep.subr.bf16.mxu0 0
    %702 = vmatpush1.bf16.msra.mxu0 %v556
    %703 = vmatprep.subr.bf16.mxu0 0
    %704 = vmatpush1.bf16.msra.mxu0 %v555
    %705 = vmatprep.subr.bf16.mxu0 0
    %706 = vmatpush1.bf16.msra.mxu0 %v554
    %707 = vmatprep.subr.bf16.mxu0 0
    %708 = vmatpush1.bf16.msra.mxu0 %v553
    %709 = vmatprep.subr.bf16.mxu0 0
    %710 = vmatpush1.bf16.msra.mxu0 %v552
    %711 = vmatprep.subr.bf16.mxu0 0
    %712 = vmatpush1.bf16.msra.mxu0 %v551
    %713 = vmatprep.subr.bf16.mxu0 0
    %714 = vmatpush1.bf16.msra.mxu0 %v550
    %715 = vmatprep.subr.bf16.mxu0 0
    %716 = vmatpush1.bf16.msra.mxu0 %v549
    %717 = vmatprep.subr.bf16.mxu0 0
    %718 = vmatpush2.bf16.msra.mxu0 0
    %719 = vmatprep.subr.bf16.mxu0 0
    %720 = vmatpush2.bf16.msra.mxu0 0
    %721 = vmatprep.subr.bf16.mxu0 0
    %722 = vmatpush2.bf16.msra.mxu0 0
    %723 = vmatprep.subr.bf16.mxu0 0
    %724 = vmatpush2.bf16.msra.mxu0 0
    %725 = vmatprep.subr.bf16.mxu0 0
    %726 = vmatpush2.bf16.msra.mxu0 0
    %727 = vmatprep.subr.bf16.mxu0 0
    %728 = vmatpush2.bf16.msra.mxu0 0
    %729 = vmatprep.subr.bf16.mxu0 0
    %730 = vmatpush2.bf16.msra.mxu0 0
    %731 = vmatprep.subr.bf16.mxu0 0
    %732 = vmatpush2.bf16.msra.mxu0 0
    %733 = vmatprep.mubr.bf16.mxu0 0
    %734 = vmatmul.mubr.bf16.gmra.mxu0 %v685
    %v735 = vpop.f32.mrf.mxu0
    %v736 = vadd.f32 %v576, %v735
    %v737 = vpop.f32.mrf.mxu0
    %v738 = vpop.f32.mrf.mxu0
    %v739 = vadd.f32 %v581, %v738
    %v740 = vpop.f32.mrf.mxu0
    %741 = vmatprep.mubr.bf16.mxu0 0
    %742 = vmatmul.mubr.bf16.gmra.mxu0 %v686
    %v743 = vpop.f32.mrf.mxu0
    %v744 = vadd.f32 %v586, %v743
    %v745 = vpop.f32.mrf.mxu0
    %v746 = vpop.f32.mrf.mxu0
    %v747 = vadd.f32 %v591, %v746
    %v748 = vpop.f32.mrf.mxu0
    %749 = vmatprep.mubr.bf16.mxu0 0
    %750 = vmatmul.mubr.bf16.gmra.mxu0 %v687
    %v751 = vpop.f32.mrf.mxu0
    %v752 = vadd.f32 %v596, %v751
    %v753 = vpop.f32.mrf.mxu0
    %v754 = vpop.f32.mrf.mxu0
    %v755 = vadd.f32 %v601, %v754
    %v756 = vpop.f32.mrf.mxu0
    %757 = vmatprep.mubr.bf16.mxu0 0
    %758 = vmatmul.mubr.bf16.gmra.mxu0 %v688
    %v759 = vpop.f32.mrf.mxu0
    %v760 = vadd.f32 %v606, %v759
    %v761 = vpop.f32.mrf.mxu0
    %v762 = vpop.f32.mrf.mxu0
    %v763 = vadd.f32 %v611, %v762
    %v764 = vpop.f32.mrf.mxu0
    %765 = vmatprep.mubr.bf16.mxu0 0
    %766 = vmatmul.mubr.bf16.gmra.mxu0 %v689
    %v767 = vpop.f32.mrf.mxu0
    %v768 = vadd.f32 %v616, %v767
    %v769 = vpop.f32.mrf.mxu0
    %v770 = vpop.f32.mrf.mxu0
    %v771 = vadd.f32 %v621, %v770
    %v772 = vpop.f32.mrf.mxu0
    %773 = vmatprep.mubr.bf16.mxu0 0
    %774 = vmatmul.mubr.bf16.gmra.mxu0 %v690
    %v775 = vpop.f32.mrf.mxu0
    %v776 = vadd.f32 %v626, %v775
    %v777 = vpop.f32.mrf.mxu0
    %v778 = vpop.f32.mrf.mxu0
    %v779 = vadd.f32 %v631, %v778
    %v780 = vpop.f32.mrf.mxu0
    %781 = vmatprep.mubr.bf16.mxu0 0
    %782 = vmatmul.mubr.bf16.gmra.mxu0 %v691
    %v783 = vpop.f32.mrf.mxu0
    %v784 = vadd.f32 %v636, %v783
    %v785 = vpop.f32.mrf.mxu0
    %v786 = vpop.f32.mrf.mxu0
    %v787 = vadd.f32 %v641, %v786
    %v788 = vpop.f32.mrf.mxu0
    %789 = vmatprep.mubr.bf16.mxu0 0
    %790 = vmatmul.mubr.bf16.gmra.mxu0 %v692
    %v791 = vpop.f32.mrf.mxu0
    %v792 = vadd.f32 %v646, %v791
    %v793 = vpop.f32.mrf.mxu0
    %v794 = vpop.f32.mrf.mxu0
    %v795 = vadd.f32 %v651, %v794
    %v796 = vpop.f32.mrf.mxu0
    %797 = vdwg.mxu0
    %v798 = vmax.f32 %v736, 0.0
    %v799 = vmax.f32 %v739, 0.0
    %v800 = vmax.f32 %v744, 0.0
    %v801 = vmax.f32 %v747, 0.0
    %v802 = vmax.f32 %v752, 0.0
    %v803 = vmax.f32 %v755, 0.0
    %v804 = vmax.f32 %v760, 0.0
    %v805 = vmax.f32 %v763, 0.0
    %v806 = vmax.f32 %v768, 0.0
    %v807 = vmax.f32 %v771, 0.0
    %v808 = vmax.f32 %v776, 0.0
    %v809 = vmax.f32 %v779, 0.0
    %v810 = vmax.f32 %v784, 0.0
    %v811 = vmax.f32 %v787, 0.0
    %v812 = vmax.f32 %v792, 0.0
    %v813 = vmax.f32 %v795, 0.0
    %v814 = vld [vmem:[%s7] sm:$0x1]
    %v815 = vpack.c.bf16 %v799, %v798
    %v816 = vpack.c.bf16 %v801, %v800
    %v817 = vpack.c.bf16 %v803, %v802
    %v818 = vpack.c.bf16 %v805, %v804
    %v819 = vpack.c.bf16 %v807, %v806
    %v820 = vpack.c.bf16 %v809, %v808
    %v821 = vpack.c.bf16 %v811, %v810
    %v822 = vpack.c.bf16 %v813, %v812
    %v823 = vld [vmem:[#allocation2] sm:$0x1]
    %825 = vset.pattern.permute.xlu0 0
    %826 = vperm.xlu0 %825, %v823
    %v827 = vpop.permute.xlu0 %826
    %v829 = vlaneseq
    %v830 = vshrl.u32 %v829, 7
    %v831 = vsub.s32 0, %v830
    %v832 = vrot.slane %v827, %v831
    %833 = vmatprep.subr.bf16.mxu0 0
    %834 = vmatpush1.bf16.msra.mxu0 %v822
    %835 = vmatprep.subr.bf16.mxu0 0
    %836 = vmatpush1.bf16.msra.mxu0 %v821
    %837 = vmatprep.subr.bf16.mxu0 0
    %838 = vmatpush1.bf16.msra.mxu0 %v820
    %839 = vmatprep.subr.bf16.mxu0 0
    %840 = vmatpush1.bf16.msra.mxu0 %v819
    %841 = vmatprep.subr.bf16.mxu0 0
    %842 = vmatpush1.bf16.msra.mxu0 %v818
    %843 = vmatprep.subr.bf16.mxu0 0
    %844 = vmatpush1.bf16.msra.mxu0 %v817
    %845 = vmatprep.subr.bf16.mxu0 0
    %846 = vmatpush1.bf16.msra.mxu0 %v816
    %847 = vmatprep.subr.bf16.mxu0 0
    %848 = vmatpush1.bf16.msra.mxu0 %v815
    %849 = vmatprep.subr.bf16.mxu0 0
    %850 = vmatpush2.bf16.msra.mxu0 0
    %851 = vmatprep.subr.bf16.mxu0 0
    %852 = vmatpush2.bf16.msra.mxu0 0
    %853 = vmatprep.subr.bf16.mxu0 0
    %854 = vmatpush2.bf16.msra.mxu0 0
    %855 = vmatprep.subr.bf16.mxu0 0
    %856 = vmatpush2.bf16.msra.mxu0 0
    %857 = vmatprep.subr.bf16.mxu0 0
    %858 = vmatpush2.bf16.msra.mxu0 0
    %859 = vmatprep.subr.bf16.mxu0 0
    %860 = vmatpush2.bf16.msra.mxu0 0
    %861 = vmatprep.subr.bf16.mxu0 0
    %862 = vmatpush2.bf16.msra.mxu0 0
    %863 = vmatprep.subr.bf16.mxu0 0
    %864 = vmatpush2.bf16.msra.mxu0 0
    %865 = vmatprep.mubr.bf16.mxu0 0
    %866 = vmatmul.mubr.bf16.gmra.mxu0 %v814
    %v867 = vpop.f32.mrf.mxu0
    %v868 = vadd.f32 %v832, %v867
    %v869 = vpop.f32.mrf.mxu0
    %v870 = vpop.f32.mrf.mxu0
    %v871 = vpop.f32.mrf.mxu0
    %872 = vdwg.mxu0
    %873 = vst [vmem:[#allocation3] sm:$0x1] %v868
    // Predicated region
    $region38: #{tpu_custom_call.1} parent=1 // pred_check
      _
    $region39: #{tpu_custom_call.1} parent=1 // pred_check_branch
      %875 = sbr.rel (0) target = $region41
    $region40: #{tpu_custom_call.1} parent=1 // pred_region
      %s877 = ssub.s32 16, 16
      %878 = vsyncadd [#allocation4], %s877
      %s880 = sshll.u32 [#allocation3], 4
      %s881 = int_to_ptr.vmem [resolvable:$true] %s880
      %883 = dma.vmem_to_hbm [thread:$0]  %s881, 16, %s9, [#allocation4]
    $region41: #{tpu_custom_call.1} parent=1 // pred_fallthru
      _
    // Predicated region
    $region42: #{tpu_custom_call.1} parent=1 // pred_check
      _
    $region43: #{tpu_custom_call.1} parent=1 // pred_check_branch
      %885 = sbr.rel (0) target = $region45
    $region44: #{tpu_custom_call.1} parent=1 // pred_region
      %886 = dma.done [#allocation4], 16
    $region45: #{tpu_custom_call.1} parent=1 // pred_fallthru
      _
    %887 = vsyncpa [#allocation4], 1

</llo_original>
